<compile_context>
chip_gen: v6e
topology: v6e:2x2x1
jax: 0.10.0
libtpu: 0.0.40
codegen_flags: <defaults>
</compile_context>

<pallas_src>
import jax
import jax.numpy as jnp
from jax.experimental import pallas as pl
from jax.experimental.pallas import tpu as pltpu


def _film_kernel(p_ref, x_ref, o_ref):
    # p_ref: (1, L) modulation row for this batch element (projected + lane-tiled).
    # x_ref / o_ref: (tile_rows, L) lane-dense slab of the input / output.
    p = p_ref[...]
    x = x_ref[...]
    o_ref[...] = ((1.0 + p) * x + p).astype(o_ref.dtype)


def _choose_lane_width(chw_rows, w, target=512):
    """Largest L = w * k (k divides chw_rows) with L <= max(target, w)."""
    best = w
    cap = max(target, w)
    for k in range(1, chw_rows + 1):
        if chw_rows % k:
            continue
        cand = w * k
        if cand > cap:
            break
        best = cand
    return best


def _choose_row_tile(rows, lane, itemsize, target_bytes=2 * 1024 * 1024):
    """Largest divisor of `rows` that is a multiple of 8 and fits ~target_bytes;
    falls back to the full extent (allowed by the (8,128) rule)."""
    target_rows = max(8, target_bytes // (lane * itemsize))
    best = None
    d = 8
    limit = min(rows, target_rows)
    while d <= limit:
        if rows % d == 0:
            best = d
        d += 8
    return best if best is not None else rows


def film_conditioning(conv_filters, conditioning, w_add_t, b_add,
                      w_mult_t=None, b_mult=None):
    """conv_filters: (N, C, H, W) with W == C; conditioning: (N, C);
    w_add_t: (C, C) = projection_add.weight^T; b_add: (C,).
    w_mult_t / b_mult accepted for parity with the module but (exactly like the
    PyTorch reference forward) they never influence the output."""
    del w_mult_t, b_mult  # _projection_mult is dead in the reference forward
    N, C, H, W = conv_filters.shape
    assert conditioning.shape == (N, C)
    assert W == C, "PyTorch broadcast in the reference forward requires W == C for 4D inputs"

    # Hoisted projection: one small XLA GEMM instead of a degenerate per-step matmul.
    p = conditioning @ w_add_t + b_add                        # (N, C) == (N, W)

    # Lane-dense repacking: flatten each batch element (row-major) to (R, L) with
    # L % W == 0, so the per-element modulation is just p tiled L//W times along lanes.
    total = C * H * W
    L = _choose_lane_width(C * H, W)
    R = total // L
    x2 = conv_filters.reshape(N, R, L)
    p3 = jnp.tile(p, (1, L // W)).reshape(N, 1, L).astype(jnp.float32)

    itemsize = jnp.dtype(conv_filters.dtype).itemsize
    tr = _choose_row_tile(R, L, itemsize)
    grid = (N, R // tr)

    out2 = pl.pallas_call(
        _film_kernel,
        out_shape=jax.ShapeDtypeStruct((N, R, L), conv_filters.dtype),
        grid=grid,
        in_specs=[
            # Modulation row: one (1, L) row per batch element, resident across row tiles.
            pl.BlockSpec((pl.Squeezed(), 1, L), lambda n, r: (n, 0, 0)),
            # Streaming lane-dense input slab tile.
            pl.BlockSpec((pl.Squeezed(), tr, L), lambda n, r: (n, r, 0)),
        ],
        out_specs=pl.BlockSpec((pl.Squeezed(), tr, L), lambda n, r: (n, r, 0)),
        compiler_params=pltpu.CompilerParams(
            dimension_semantics=("parallel", "parallel"),
            vmem_limit_bytes=32 * 1024 * 1024,
        ),
    )(p3, x2)

    return out2.reshape(N, C, H, W)


if __name__ == "__main__":
    key = jax.random.PRNGKey(0)
    k1, k2, k3, k4 = jax.random.split(key, 4)

    # Small shapes consistent with the module; W == C is required by the reference
    # module's own broadcasting for 4D inputs.
    N, C, H, W = 2, 16, 8, 16

    x = jax.random.normal(k1, (N, C, H, W), jnp.float32)
    cond = jax.random.normal(k2, (N, C), jnp.float32)

    # Parameter shapes from __init__: nn.Linear(C, C) -> weight (C, C), bias (C,).
    # The reference zero-inits them (identity op); use small deterministic random
    # values instead so the kernel math is actually exercised.
    w_add_t = 0.1 * jax.random.normal(k3, (C, C), jnp.float32)   # stored as weight^T
    b_add = 0.1 * jax.random.normal(k4, (C,), jnp.float32)

    out = film_conditioning(x, cond, w_add_t, b_add)
    jax.block_until_ready(out)

    # Plain-JAX reference check (same math as the PyTorch forward).
    p = cond @ w_add_t + b_add                    # (N, C)
    p4 = p[:, None, None, :]                      # (N, 1, 1, C) -> broadcasts over last axis
    ref = (1.0 + p4) * x + p4
    assert out.shape == x.shape
    assert out.dtype == x.dtype
    assert jnp.allclose(out, ref, atol=1e-5, rtol=1e-5)

    print("KERNEL_OK")
</pallas_src>

<mosaic_0001>
module attributes {stable_mosaic.version = 11 : i64} {
  func.func @_film_kernel(%arg0: i32, %arg1: i32, %arg2: memref<1x1x512xf32, #tpu.memory_space<vmem>>, %arg3: memref<1x4x512xf32, #tpu.memory_space<vmem>>, %arg4: memref<1x4x512xf32, #tpu.memory_space<vmem>>) attributes {dimension_semantics = [#tpu.dimension_semantics<parallel>, #tpu.dimension_semantics<parallel>], iteration_bounds = array<i64: 2, 1>, scalar_prefetch = 0 : i64, scratch_operands = 0 : i64, tpu.core_type = #tpu.core_type<tc>, window_params = [{transform_indices = @transform_0, window_bounds = array<i64: 1, 1, 512>}, {transform_indices = @transform_1, window_bounds = array<i64: 1, 4, 512>}, {transform_indices = @transform_2, window_bounds = array<i64: 1, 4, 512>}]} {
    %c0 = arith.constant 0 : index
    %c0_0 = arith.constant 0 : index
    %c0_1 = arith.constant 0 : index
    %0 = vector.load %arg2[%c0, %c0_0, %c0_1] : memref<1x1x512xf32, #tpu.memory_space<vmem>>, vector<1x1x512xf32>
    %1 = vector.shape_cast %0 : vector<1x1x512xf32> to vector<1x512xf32>
    %c0_2 = arith.constant 0 : index
    %c0_3 = arith.constant 0 : index
    %c0_4 = arith.constant 0 : index
    %2 = vector.load %arg3[%c0_2, %c0_3, %c0_4] : memref<1x4x512xf32, #tpu.memory_space<vmem>>, vector<1x4x512xf32>
    %3 = vector.shape_cast %2 : vector<1x4x512xf32> to vector<4x512xf32>
    %cst = arith.constant 1.000000e+00 : f32
    %4 = vector.broadcast %cst : f32 to vector<1x512xf32>
    %5 = arith.addf %4, %1 : vector<1x512xf32>
    %6 = vector.broadcast %5 : vector<1x512xf32> to vector<4x512xf32>
    %7 = arith.mulf %6, %3 : vector<4x512xf32>
    %8 = vector.broadcast %1 : vector<1x512xf32> to vector<4x512xf32>
    %9 = arith.addf %7, %8 : vector<4x512xf32>
    %c0_5 = arith.constant 0 : index
    %c0_6 = arith.constant 0 : index
    %c0_7 = arith.constant 0 : index
    %10 = vector.load %arg4[%c0_5, %c0_6, %c0_7] : memref<1x4x512xf32, #tpu.memory_space<vmem>>, vector<1x4x512xf32>
    %11 = vector.shape_cast %10 : vector<1x4x512xf32> to vector<4x512xf32>
    %12 = vector.shape_cast %9 : vector<4x512xf32> to vector<1x4x512xf32>
    tpu.vector_store %arg4[%c0_5, %c0_6, %c0_7], %12 {strides = array<i32>} : memref<1x4x512xf32, #tpu.memory_space<vmem>>, vector<1x4x512xf32>,
    return
  }
  func.func @transform_0(%arg0: i32, %arg1: i32) -> (i32, i32, i32) {
    %c0_i32 = arith.constant 0 : i32
    %c0_i32_0 = arith.constant 0 : i32
    %c0_i32_1 = arith.constant 0 : i32
    return %arg0, %c0_i32, %c0_i32_0 : i32, i32, i32
  }
  func.func @transform_1(%arg0: i32, %arg1: i32) -> (i32, i32, i32) {
    %c0_i32 = arith.constant 0 : i32
    %c0_i32_0 = arith.constant 0 : i32
    return %arg0, %arg1, %c0_i32 : i32, i32, i32
  }
  func.func @transform_2(%arg0: i32, %arg1: i32) -> (i32, i32, i32) {
    %c0_i32 = arith.constant 0 : i32
    %c0_i32_0 = arith.constant 0 : i32
    return %arg0, %arg1, %c0_i32 : i32, i32, i32
  }
}

</mosaic_0001>

<llo_original>
// kernel: tpu_custom_call.1
$region0: #{tpu_custom_call.1}
  #allocation0 [shape = 'u32[]', space=smem, size = 0x4, offset = 0x4, fixed_abs, tag = 'smem constant byte address 0x4 - core index']
  #allocation1 [shape = 'u32[144,128]{1,0:T(1,128)}', space=vmem, size = 0x12000, scoped, tag = 'internal scratch']
  %s0 = inlined_call_operand.hbm [shape: f32[2,1,512], index: 0, kind: input, shape index: {}]
  %s1 = inlined_call_operand.hbm [shape: f32[2,4,512], index: 1, kind: input, shape index: {}]
  %s2 = inlined_call_operand.hbm [shape: f32[2,4,512], index: 2, kind: output, shape index: {}]
  %s3 = sld [smem:[#allocation0]]
  $region49: #{tpu_custom_call.1} parent=0
    _
  %s5 = ssub.s32 1, %s3
  %s6 = scalar_select 0, %s5, %s3
  $region1: #{tpu_custom_call.1} parent=0
    #allocation2 [shape = 'u8[4096]{0}', space=vmem, size = 0x1000, scoped, tag = 'input window, operand 0']
    #allocation3 [shape = 's32[2]{0}', space=sflag, size = 0x8, scoped, tag = 'scoped memory for tpu_custom_call.1']
    #allocation4 [shape = 's32[2]{0}', space=sflag, size = 0x8, scoped, tag = 'scoped memory for tpu_custom_call.1']
    #allocation5 [shape = 'u8[16384]{0}', space=vmem, size = 0x4000, scoped, tag = 'input window, operand 1']
    #allocation6 [shape = 's32[2]{0}', space=sflag, size = 0x8, scoped, tag = 'scoped memory for tpu_custom_call.1']
    #allocation7 [shape = 'u8[16384]{0}', space=vmem, size = 0x4000, scoped, tag = 'output window, operand 0']
    %7 = vsyncpa [#allocation3], 0
    %s8 = scalar_lea.sflag [#allocation3], 1
    %9 = vsyncpa %s8, 0
    %10 = vsyncpa [#allocation6], 0
    %s11 = scalar_lea.sflag [#allocation6], 1
    %12 = vsyncpa %s11, 0
    %13 = vsyncpa [#allocation4], 0
    %s14 = scalar_lea.sflag [#allocation4], 1
    %15 = vsyncpa %s14, 0
    loop: start=0, step=1, limit=4
    $region2: #{tpu_custom_call.1} parent=1 // loop_pre_header
      _
    $region3: #{tpu_custom_call.1} parent=1 // loop_header
      %s17 = sphi 0, %s21
      %p18 = scmp.ge.s32.totalorder %s17, 4
      %s24 = sphi 0, %s36
      %s25 = sphi 0, %s32
      %s26 = sphi 0, %s24
      %s27 = sphi 0, %s25
      %s28 = sphi 0, %s26
      %s29 = sphi 0, %s27
      %s39 = sphi 0, %s41
      %s42 = sphi 0, %s39
      %s43 = sphi 0, %s42
      %s59 = sphi 0, %s43
      %s67 = sphi 0, %s69
      %s70 = sphi 0, %s67
      %s71 = sphi 0, %s70
      %s87 = sphi 0, %s71
      %s95 = sphi 0, %s97
      %s98 = sphi 0, %s95
      %s99 = sphi 0, %s98
      %s115 = sphi 0, %s99
    $region4: #{tpu_custom_call.1} parent=1 // loop_header_branch
      %20 = sbr.rel (%p18) target = $region8
    $region5: #{tpu_custom_call.1} parent=1 // loop_body
      %s22 = ssub.s32 %s17, 1
      %s23 = ssub.s32 %s17, 2
      %s30 = sadd.s32 1, %s25
      %p31 = scmp.ge.s32.totalorder %s30, 1
      %s32 = scalar_select %p31, 0, %s30
      %s33 = sadd.s32 1, %s24
      %s34 = scalar_select %p31, %s33, %s24
      %p35 = scmp.ge.s32.totalorder %s34, 2
      %s36 = scalar_select %p35, 0, %s34
      %s37 = ssub.s32 %s24, %s36
      %p38 = scmp.eq.s32.totalorder %s37, 0
      %s40 = sadd.s32 %s39, 1
      %s41 = scalar_select %p38, %s39, %s40
      %p44 = pneg %p38
      %p45 = scmp.eq.s32.totalorder %s17, 1
      %p46 = por %p44, %p45
      %p47 = scmp.ne.s32.totalorder %s39, %s42
      %p48 = scmp.eq.s32.totalorder %s17, 0
      %p49 = por %p47, %p48
      %p50 = scmp.ne.s32.totalorder %s39, %s42
      %p51 = scmp.eq.s32.totalorder %s22, 1
      %p52 = por %p50, %p51
      %p53 = scmp.ne.s32.totalorder %s42, %s43
      %p54 = scmp.eq.s32.totalorder %s22, 0
      %p55 = por %p53, %p54
      %p56 = scmp.ne.s32.totalorder %s42, %s43
      %p57 = scmp.eq.s32.totalorder %s23, 1
      %p58 = por %p56, %p57
      %p60 = scmp.ne.s32.totalorder %s43, %s59
      %p61 = scmp.eq.s32.totalorder %s23, 0
      %p62 = por %p60, %p61
      %s63 = ssub.s32 %s24, %s36
      %s64 = ssub.s32 %s25, %s32
      %s65 = sor.u32 %s63, %s64
      %p66 = scmp.eq.s32.totalorder %s65, 0
      %s68 = sadd.s32 %s67, 1
      %s69 = scalar_select %p66, %s67, %s68
      %p72 = pneg %p66
      %p73 = scmp.eq.s32.totalorder %s17, 1
      %p74 = por %p72, %p73
      %p75 = scmp.ne.s32.totalorder %s67, %s70
      %p76 = scmp.eq.s32.totalorder %s17, 0
      %p77 = por %p75, %p76
      %p78 = scmp.ne.s32.totalorder %s67, %s70
      %p79 = scmp.eq.s32.totalorder %s22, 1
      %p80 = por %p78, %p79
      %p81 = scmp.ne.s32.totalorder %s70, %s71
      %p82 = scmp.eq.s32.totalorder %s22, 0
      %p83 = por %p81, %p82
      %p84 = scmp.ne.s32.totalorder %s70, %s71
      %p85 = scmp.eq.s32.totalorder %s23, 1
      %p86 = por %p84, %p85
      %p88 = scmp.ne.s32.totalorder %s71, %s87
      %p89 = scmp.eq.s32.totalorder %s23, 0
      %p90 = por %p88, %p89
      %s91 = ssub.s32 %s24, %s36
      %s92 = ssub.s32 %s25, %s32
      %s93 = sor.u32 %s91, %s92
      %p94 = scmp.eq.s32.totalorder %s93, 0
      %s96 = sadd.s32 %s95, 1
      %s97 = scalar_select %p94, %s95, %s96
      %p100 = pneg %p94
      %p101 = scmp.eq.s32.totalorder %s17, 1
      %p102 = por %p100, %p101
      %p103 = scmp.ne.s32.totalorder %s95, %s98
      %p104 = scmp.eq.s32.totalorder %s17, 0
      %p105 = por %p103, %p104
      %p106 = scmp.ne.s32.totalorder %s95, %s98
      %p107 = scmp.eq.s32.totalorder %s22, 1
      %p108 = por %p106, %p107
      %p109 = scmp.ne.s32.totalorder %s98, %s99
      %p110 = scmp.eq.s32.totalorder %s22, 0
      %p111 = por %p109, %p110
      %p112 = scmp.ne.s32.totalorder %s98, %s99
      %p113 = scmp.eq.s32.totalorder %s23, 1
      %p114 = por %p112, %p113
      %p116 = scmp.ne.s32.totalorder %s99, %s115
      %p117 = scmp.eq.s32.totalorder %s23, 0
      %p118 = por %p116, %p117
      %p119 = scmp.le.s32.totalorder 1, %s17
      %p120 = scmp.lt.s32.totalorder %s17, 3
      %p121 = pnand %p119, %p120
      %p122 = pneg %p121
      // Predicated region
      $region9: #{tpu_custom_call.1} parent=5 // pred_check
        _
      $region10: #{tpu_custom_call.1} parent=5 // pred_check_branch
        %124 = sbr.rel (%p121) target = $region12
      $region11: #{tpu_custom_call.1} parent=5 // pred_region
        %s125 = ssub.s32 %s17, 1
      $region12: #{tpu_custom_call.1} parent=5 // pred_fallthru
        _
      %p126 = scmp.lt.s32.totalorder %s17, 2
      // Predicated region
      $region13: #{tpu_custom_call.1} parent=5 // pred_check
        %p127 = pneg %p126
      $region14: #{tpu_custom_call.1} parent=5 // pred_check_branch
        %129 = sbr.rel (%p127) target = $region16
      $region15: #{tpu_custom_call.1} parent=5 // pred_region
        // Predicated region
        $region17: #{tpu_custom_call.1} parent=15 // pred_check
          %p130 = pneg %p49
        $region18: #{tpu_custom_call.1} parent=15 // pred_check_branch
          %132 = sbr.rel (%p130) target = $region20
        $region19: #{tpu_custom_call.1} parent=15 // pred_region
          %s133 = sand.u32 %s39, 1
          %s134 = scalar_lea.sflag [#allocation3], %s133
          %s135 = sand.u32 %s39, 1
          %s136 = smul.addr %s135, 4
          %s137 = scalar_lea.vmem [#allocation2], %s136
          %s139 = ssub.s32 64, 64
          %140 = vsyncadd %s134, %s139
          %s141 = smul.addr %s24, 4
          %s142 = smul.addr %s141, 16
          %s143 = scalar_lea.hbm %s0, %s142
          %s145 = sshll.u32 %s137, 4
          %s146 = int_to_ptr.vmem [resolvable:$true] %s145
          %148 = dma.hbm_to_vmem [thread:$0]  %s143, 64, %s146, %s134
        $region20: #{tpu_custom_call.1} parent=15 // pred_fallthru
          _
        // Predicated region
        $region21: #{tpu_custom_call.1} parent=15 // pred_check
          %p149 = pneg %p77
        $region22: #{tpu_custom_call.1} parent=15 // pred_check_branch
          %151 = sbr.rel (%p149) target = $region24
        $region23: #{tpu_custom_call.1} parent=15 // pred_region
          %s152 = sand.u32 %s67, 1
          %s153 = scalar_lea.sflag [#allocation6], %s152
          %s154 = sand.u32 %s67, 1
          %s155 = smul.addr %s154, 16
          %s156 = scalar_lea.vmem [#allocation5], %s155
          %s158 = ssub.s32 256, 256
          %159 = vsyncadd %s153, %s158
          %s160 = smul.addr %s25, 4
          %s161 = smul.addr %s24, 4
          %s162 = sadd.s32 %s160, %s161
          %s163 = smul.addr %s162, 64
          %s164 = scalar_lea.hbm %s1, %s163
          %s166 = sshll.u32 %s156, 4
          %s167 = int_to_ptr.vmem [resolvable:$true] %s166
          %169 = dma.hbm_to_vmem [thread:$0]  %s164, 256, %s167, %s153
        $region24: #{tpu_custom_call.1} parent=15 // pred_fallthru
          _
      $region16: #{tpu_custom_call.1} parent=5 // pred_fallthru
        _
      %p170 = scmp.le.s32.totalorder 1, %s17
      %p171 = scmp.lt.s32.totalorder %s17, 3
      %p172 = pnand %p170, %p171
      %p173 = pneg %p172
      // Predicated region
      $region25: #{tpu_custom_call.1} parent=5 // pred_check
        _
      $region26: #{tpu_custom_call.1} parent=5 // pred_check_branch
        %175 = sbr.rel (%p172) target = $region28
      $region27: #{tpu_custom_call.1} parent=5 // pred_region
        %s176 = ssub.s32 %s17, 1
        %s177 = sand.u32 %s42, 1
        %s178 = scalar_lea.sflag [#allocation3], %s177
        %s179 = sand.u32 %s42, 1
        %s180 = smul.addr %s179, 4
        %s181 = scalar_lea.vmem [#allocation2], %s180
        // Predicated region
        $region29: #{tpu_custom_call.1} parent=27 // pred_check
          %p182 = pneg %p55
        $region30: #{tpu_custom_call.1} parent=27 // pred_check_branch
          %184 = sbr.rel (%p182) target = $region32
        $region31: #{tpu_custom_call.1} parent=27 // pred_region
          %185 = dma.done %s178, 64
        $region32: #{tpu_custom_call.1} parent=27 // pred_fallthru
          _
        %s186 = sand.u32 %s70, 1
        %s187 = scalar_lea.sflag [#allocation6], %s186
        %s188 = sand.u32 %s70, 1
        %s189 = smul.addr %s188, 16
        %s190 = scalar_lea.vmem [#allocation5], %s189
        // Predicated region
        $region33: #{tpu_custom_call.1} parent=27 // pred_check
          %p191 = pneg %p83
        $region34: #{tpu_custom_call.1} parent=27 // pred_check_branch
          %193 = sbr.rel (%p191) target = $region36
        $region35: #{tpu_custom_call.1} parent=27 // pred_region
          %194 = dma.done %s187, 256
        $region36: #{tpu_custom_call.1} parent=27 // pred_fallthru
          _
        %s195 = sand.u32 %s42, 1
        %s196 = scalar_lea.sflag [#allocation3], %s195
        %s197 = sand.u32 %s42, 1
        %s198 = smul.addr %s197, 4
        %s199 = scalar_lea.vmem [#allocation2], %s198
        %p200 = pneg %p55
        %p201 = pneg %p52
        %s202 = sand.u32 %s70, 1
        %s203 = scalar_lea.sflag [#allocation6], %s202
        %s204 = sand.u32 %s70, 1
        %s205 = smul.addr %s204, 16
        %s206 = scalar_lea.vmem [#allocation5], %s205
        %p207 = pneg %p83
        %p208 = pneg %p80
        %p209 = pneg %p111
        %p210 = pneg %p108
        %s211 = sand.u32 %s98, 1
        %s212 = scalar_lea.sflag [#allocation4], %s211
        %s213 = sand.u32 %s98, 1
        %s214 = smul.addr %s213, 16
        %s215 = scalar_lea.vmem [#allocation7], %s214
        %v216 = vld [vmem:[%s181] sm:$0xf]
        %v217 = vld [vmem:[%s190] sm:$0xff]
        %v218 = vld [vmem:[%s190 + $0x8] sm:$0xff]
        %v219 = vadd.f32 %v216, 1.0
        %v221 = vlaneseq
        %v222 = vshrl.u32 %v221, 7
        %v223 = vsub.s32 0, %v222
        %v224 = vrot.slane %v219, %v223
        %v225 = vlaneseq
        %v226 = vshrl.u32 %v225, 7
        %v227 = vsub.s32 1, %v226
        %v228 = vrot.slane %v219, %v227
        %v229 = vlaneseq
        %v230 = vshrl.u32 %v229, 7
        %v231 = vsub.s32 2, %v230
        %v232 = vrot.slane %v219, %v231
        %v233 = vlaneseq
        %v234 = vshrl.u32 %v233, 7
        %v235 = vsub.s32 3, %v234
        %v236 = vrot.slane %v219, %v235
        %v243 = vcombine.high %v217, %v217
        %v244 = vcombine.high %v218, %v218
        %v247 = vmul.f32 %v224, %v217
        %v248 = vmul.f32 %v228, %v243
        %v249 = vmul.f32 %v232, %v218
        %v250 = vmul.f32 %v236, %v244
        %v252 = vlaneseq
        %v253 = vshrl.u32 %v252, 7
        %v254 = vsub.s32 0, %v253
        %v255 = vrot.slane %v216, %v254
        %v256 = vlaneseq
        %v257 = vshrl.u32 %v256, 7
        %v258 = vsub.s32 1, %v257
        %v259 = vrot.slane %v216, %v258
        %v260 = vlaneseq
        %v261 = vshrl.u32 %v260, 7
        %v262 = vsub.s32 2, %v261
        %v263 = vrot.slane %v216, %v262
        %v264 = vlaneseq
        %v265 = vshrl.u32 %v264, 7
        %v266 = vsub.s32 3, %v265
        %v267 = vrot.slane %v216, %v266
        %v272 = vadd.f32 %v247, %v255
        %v273 = vadd.f32 %v248, %v259
        %v274 = vadd.f32 %v249, %v263
        %v275 = vadd.f32 %v250, %v267
        %v280 = vcombine.low %v272, %v273
        %v281 = vcombine.low %v274, %v275
        %284 = vst [vmem:[%s215] sm:$0xff] %v280
        %285 = vst [vmem:[%s215 + $0x8] sm:$0xff] %v281
        %s286 = sand.u32 %s98, 1
        %s287 = scalar_lea.sflag [#allocation4], %s286
        %s288 = sand.u32 %s98, 1
        %s289 = smul.addr %s288, 16
        %s290 = scalar_lea.vmem [#allocation7], %s289
        // Predicated region
        $region37: #{tpu_custom_call.1} parent=27 // pred_check
          %p291 = pneg %p108
        $region38: #{tpu_custom_call.1} parent=27 // pred_check_branch
          %293 = sbr.rel (%p291) target = $region40
        $region39: #{tpu_custom_call.1} parent=27 // pred_region
          %s295 = ssub.s32 256, 256
          %296 = vsyncadd %s287, %s295
          %s297 = smul.addr %s27, 4
          %s298 = smul.addr %s26, 4
          %s299 = sadd.s32 %s297, %s298
          %s300 = smul.addr %s299, 64
          %s301 = scalar_lea.hbm %s2, %s300
          %s303 = sshll.u32 %s290, 4
          %s304 = int_to_ptr.vmem [resolvable:$true] %s303
          %306 = dma.vmem_to_hbm [thread:$0]  %s304, 256, %s301, %s287
        $region40: #{tpu_custom_call.1} parent=27 // pred_fallthru
          _
      $region28: #{tpu_custom_call.1} parent=5 // pred_fallthru
        _
      %p307 = scmp.le.s32.totalorder 2, %s17
      // Predicated region
      $region41: #{tpu_custom_call.1} parent=5 // pred_check
        %p308 = pneg %p307
      $region42: #{tpu_custom_call.1} parent=5 // pred_check_branch
        %310 = sbr.rel (%p308) target = $region44
      $region43: #{tpu_custom_call.1} parent=5 // pred_region
        %s311 = ssub.s32 %s17, 2
        // Predicated region
        $region45: #{tpu_custom_call.1} parent=43 // pred_check
          %p312 = pneg %p114
        $region46: #{tpu_custom_call.1} parent=43 // pred_check_branch
          %314 = sbr.rel (%p312) target = $region48
        $region47: #{tpu_custom_call.1} parent=43 // pred_region
          %s315 = sand.u32 %s99, 1
          %s316 = scalar_lea.sflag [#allocation4], %s315
          %s317 = sand.u32 %s99, 1
          %s318 = smul.addr %s317, 16
          %s319 = scalar_lea.vmem [#allocation7], %s318
          %320 = dma.done %s316, 256
        $region48: #{tpu_custom_call.1} parent=43 // pred_fallthru
          _
      $region44: #{tpu_custom_call.1} parent=5 // pred_fallthru
        _
    $region6: #{tpu_custom_call.1} parent=1 // loop_footer
      %s21 = sadd.s32 1, %s17
    $region7: #{tpu_custom_call.1} parent=1 // loop_footer_branch
      %16 = sbr.rel target = $region3
    $region8: #{tpu_custom_call.1} parent=1 // loop_exit
      _
    %321 = vsyncpa [#allocation3], 1
    %s322 = scalar_lea.sflag [#allocation3], 1
    %323 = vsyncpa %s322, 1
    %324 = vsyncpa [#allocation6], 1
    %s325 = scalar_lea.sflag [#allocation6], 1
    %326 = vsyncpa %s325, 1
    %327 = vsyncpa [#allocation4], 1
    %s328 = scalar_lea.sflag [#allocation4], 1
    %329 = vsyncpa %s328, 1

</llo_original>
